<compile_context>
chip_gen: v6e
topology: v6e:2x2x1
jax: 0.10.0
libtpu: 0.0.40
codegen_flags: <defaults>
</compile_context>

<pallas_src>
import functools

import jax
import jax.numpy as jnp
from jax import lax
from jax.experimental import pallas as pl
from jax.experimental.pallas import tpu as pltpu

_CHUNK = 8            # f32 sublane granularity along the C (reduction) axis
_STATIC_LOOP_MAX = 8  # at/below this trip count use an unrolled Python loop


def _stddev_loss_kernel(alpha_ref, o_ref, t_ref, std_ref, d2_ref, *, lane_block):
    """alpha_ref: (1,1) f32 in SMEM.
    o_ref / t_ref: [B, C, TS] input tiles in VMEM.
    std_ref: [B, TS] <- alpha * |std_C(o) - std_C(t)|  (unbiased, ddof=1)
    d2_ref : [B, TS] <- sum over C of (o - t)^2        (partial MSE numerator)
    """
    B, C, TS = o_ref.shape
    alpha = alpha_ref[0, 0]
    n_full = C // _CHUNK
    rem = C % _CHUNK
    inv_c = 1.0 / C
    # C == 1 intentionally yields NaN (ddof=1), matching torch's unbiased std.
    inv_cm1 = (1.0 / (C - 1)) if C > 1 else float("nan")

    def process(ls0):
        lane = pl.ds(ls0, lane_block)

        # Per-position shift (channel 0): makes the one-pass variance
        #   ss = sum(y^2) - sum(y)^2 / C,  y = x - shift
        # robust against catastrophic cancellation for large-mean inputs.
        shift_o = o_ref[:, 0:1, lane].astype(jnp.float32)   # [B, 1, LS]
        shift_t = t_ref[:, 0:1, lane].astype(jnp.float32)
        bc = _CHUNK if n_full > 0 else max(rem, 1)
        # Hoisted broadcasts (JAX does not CSE broadcast_in_dim inside loops).
        shift_ob = jnp.broadcast_to(shift_o, (B, bc, lane_block))
        shift_tb = jnp.broadcast_to(shift_t, (B, bc, lane_block))

        # ---- single streaming pass over C: elementwise accumulation in sublane
        #      shape [B, CHUNK, LS]; ONE cross-sublane reduce per quantity at the end.
        def body_c0(c0, carry):
            s_o, s_t, q_o, q_t, dd = carry
            o = o_ref[:, pl.ds(c0, _CHUNK), lane].astype(jnp.float32)  # per-chunk cast (bf16-safe)
            t = t_ref[:, pl.ds(c0, _CHUNK), lane].astype(jnp.float32)
            d = o - t
            yo = o - shift_ob
            yt = t - shift_tb
            return (s_o + yo, s_t + yt, q_o + yo * yo, q_t + yt * yt, dd + d * d)

        if n_full > 0:
            init = tuple(jnp.zeros((B, _CHUNK, lane_block), jnp.float32) for _ in range(5))
            if n_full > _STATIC_LOOP_MAX:
                def body(ci, carry):
                    return body_c0(pl.multiple_of(ci * _CHUNK, _CHUNK), carry)
                carry = lax.fori_loop(0, n_full, body, init, unroll=2)
            else:
                carry = init
                for ci in range(n_full):
                    carry = body_c0(ci * _CHUNK, carry)
            s_o, s_t, q_o, q_t, dd = [jnp.sum(a, axis=1) for a in carry]
        else:
            z = jnp.zeros((B, lane_block), jnp.float32)
            s_o, s_t, q_o, q_t, dd = z, z, z, z, z

        if rem:
            c0 = n_full * _CHUNK
            o = o_ref[:, c0:C, lane].astype(jnp.float32)
            t = t_ref[:, c0:C, lane].astype(jnp.float32)
            d = o - t
            yo = o - shift_ob[:, :rem, :]
            yt = t - shift_tb[:, :rem, :]
            s_o = s_o + jnp.sum(yo, axis=1)
            s_t = s_t + jnp.sum(yt, axis=1)
            q_o = q_o + jnp.sum(yo * yo, axis=1)
            q_t = q_t + jnp.sum(yt * yt, axis=1)
            dd = dd + jnp.sum(d * d, axis=1)

        # Unbiased variance; clamp tiny negative rounding residue before sqrt.
        ss_o = jnp.maximum(q_o - s_o * s_o * inv_c, 0.0)
        ss_t = jnp.maximum(q_t - s_t * s_t * inv_c, 0.0)
        std_o = jnp.sqrt(ss_o * inv_cm1)
        std_t = jnp.sqrt(ss_t * inv_cm1)

        std_ref[:, lane] = (alpha * jnp.abs(std_o - std_t)).astype(std_ref.dtype)
        d2_ref[:, lane] = dd.astype(d2_ref.dtype)

    # Inner lane sub-tiling: bounds vreg working set while the DMA tile (TS) stays big.
    n_lane_blocks = TS // lane_block
    if n_lane_blocks <= _STATIC_LOOP_MAX:
        for lb in range(n_lane_blocks):
            process(lb * lane_block)
    else:
        @pl.loop(0, n_lane_blocks)
        def _(lb):
            process(pl.multiple_of(lb * lane_block, 128))


def _tpu_vmem_bytes():
    try:
        return int(pltpu.get_tpu_info().vmem_capacity_bytes)
    except Exception:
        return 64 << 20  # conservative fallback (v7x-sized)


def _choose_s_tile(S, B, C, itemsize):
    """Largest 128-multiple tile dividing S that keeps double-buffered inputs inside a
    generation-aware VMEM budget, preferring an even grid of >= 2 steps (v7x megacore +
    DMA/compute overlap) and naturally preferring large tiles (long DMA rows)."""
    if S % 128 != 0:
        return S  # full-extent block is always legal
    budget = _tpu_vmem_bytes() // 2              # inputs: 2 operands x 2 pipeline buffers
    per_col = 2 * 2 * B * C * itemsize
    cap = max(128, (budget // max(per_col, 1)) // 128 * 128)
    cap = min(cap, S)
    candidates = [t for t in range(128, cap + 1, 128) if S % t == 0]
    if not candidates:
        return S
    even_ge2 = [t for t in candidates if (S // t) >= 2 and (S // t) % 2 == 0]
    ge2 = [t for t in candidates if (S // t) >= 2]
    if even_ge2:
        return max(even_ge2)
    if ge2:
        return max(ge2)
    return max(candidates)


def _choose_lane_block(TS, B):
    """Lane sub-tile so ~12 live [B, 8, LS] f32 tiles (5 accumulators + 2 hoisted
    shifts + chunk temporaries) stay comfortably under the 64-entry vreg file."""
    if TS % 128 != 0:
        return TS
    live_tiles = 12
    max_lane_vregs = max(1, 48 // (live_tiles * max(B, 1)))
    ls = min(TS, max_lane_vregs * 128)
    ls = max(128, (ls // 128) * 128)
    while TS % ls != 0:
        ls -= 128
    return max(ls, 128)


def stddev_loss(outputs, targets, alpha=1.0):
    """outputs, targets: [B, C, *spatial]. Returns [B, *spatial] float32 (torch shape semantics)."""
    assert outputs.shape == targets.shape and outputs.ndim >= 2
    B, C = outputs.shape[:2]
    spatial = outputs.shape[2:]
    S = 1
    for d in spatial:
        S *= int(d)
    S = max(S, 1)
    o3 = outputs.reshape(B, C, S)
    t3 = targets.reshape(B, C, S)

    itemsize = jnp.dtype(o3.dtype).itemsize
    TS = _choose_s_tile(S, B, C, itemsize)
    LS = _choose_lane_block(TS, B)
    grid = (S // TS,)

    vmem_limit = max(32 << 20, (_tpu_vmem_bytes() * 3) // 4)  # ~96 MiB on v6e, ~48 MiB on v7x

    alpha_arr = jnp.full((1, 1), alpha, dtype=jnp.float32)
    kernel = functools.partial(_stddev_loss_kernel, lane_block=LS)

    std_scaled, d2 = pl.pallas_call(
        kernel,
        out_shape=(
            jax.ShapeDtypeStruct((B, S), jnp.float32),
            jax.ShapeDtypeStruct((B, S), jnp.float32),
        ),
        grid=grid,
        in_specs=[
            pl.BlockSpec(memory_space=pltpu.MemorySpace.SMEM),        # alpha scalar
            pl.BlockSpec((B, C, TS), lambda s: (0, 0, s)),            # outputs tile
            pl.BlockSpec((B, C, TS), lambda s: (0, 0, s)),            # targets tile
        ],
        out_specs=(
            pl.BlockSpec((B, TS), lambda s: (0, s)),                  # alpha * |std diff|
            pl.BlockSpec((B, TS), lambda s: (0, s)),                  # per-position sum_C (o-t)^2
        ),
        compiler_params=pltpu.CompilerParams(
            # S-tiles are independent -> shard across TensorCores on v7x (neutral elsewhere).
            dimension_semantics=("parallel",),
            vmem_limit_bytes=int(vmem_limit),
        ),
    )(alpha_arr, o3, t3)

    # Epilogue touches only [B, S] data (C-times smaller than the inputs): essentially free.
    n_total = float(B * C * S)
    mse = jnp.sum(d2) / n_total
    result = std_scaled + mse
    return result.reshape((B,) + spatial)


def _reference(outputs, targets, alpha=1.0):
    # Pure-JAX reference mirroring torch semantics (unbiased std, ddof=1).
    mse = jnp.mean((outputs - targets) ** 2)
    std_o = jnp.std(outputs, axis=1, ddof=1)
    std_t = jnp.std(targets, axis=1, ddof=1)
    return mse + alpha * jnp.abs(std_o - std_t)


if __name__ == "__main__":
    key = jax.random.PRNGKey(0)
    k1, k2 = jax.random.split(key)
    B, C, H, W = 2, 4, 16, 16
    outputs = jax.random.normal(k1, (B, C, H, W), dtype=jnp.float32)
    targets = jax.random.normal(k2, (B, C, H, W), dtype=jnp.float32)

    alpha = 1.0
    result = stddev_loss(outputs, targets, alpha=alpha)
    result = jax.block_until_ready(result)

    ref = _reference(outputs, targets, alpha=alpha)
    assert result.shape == (B, H, W)
    assert jnp.allclose(result, ref, atol=1e-5, rtol=1e-5), (
        f"max abs err = {jnp.max(jnp.abs(result - ref))}"
    )

    print("KERNEL_OK")
</pallas_src>

<mosaic_0001>
module attributes {stable_mosaic.version = 11 : i64} {
  func.func @_stddev_loss_kernel(%arg0: i32, %arg1: memref<1x1xf32, #tpu.memory_space<smem>>, %arg2: memref<2x4x128xf32, #tpu.memory_space<vmem>>, %arg3: memref<2x4x128xf32, #tpu.memory_space<vmem>>, %arg4: memref<2x128xf32, #tpu.memory_space<vmem>>, %arg5: memref<2x128xf32, #tpu.memory_space<vmem>>) attributes {dimension_semantics = [#tpu.dimension_semantics<parallel>], iteration_bounds = array<i64: 2>, scalar_prefetch = 0 : i64, scratch_operands = 0 : i64, tpu.core_type = #tpu.core_type<tc>, window_params = [{transform_indices = @transform_0, window_bounds = array<i64: 1, 1>}, {transform_indices = @transform_1, window_bounds = array<i64: 2, 4, 128>}, {transform_indices = @transform_2, window_bounds = array<i64: 2, 4, 128>}, {transform_indices = @transform_3, window_bounds = array<i64: 2, 128>}, {transform_indices = @transform_4, window_bounds = array<i64: 2, 128>}]} {
    %c0 = arith.constant 0 : index
    %c0_0 = arith.constant 0 : index
    %0 = memref.load %arg1[%c0, %c0_0] : memref<1x1xf32, #tpu.memory_space<smem>>
    %c0_1 = arith.constant 0 : index
    %c0_2 = arith.constant 0 : index
    %c0_3 = arith.constant 0 : index
    %1 = vector.load %arg2[%c0_1, %c0_2, %c0_3] : memref<2x4x128xf32, #tpu.memory_space<vmem>>, vector<2x1x128xf32>
    %c0_4 = arith.constant 0 : index
    %c0_5 = arith.constant 0 : index
    %c0_6 = arith.constant 0 : index
    %2 = vector.load %arg3[%c0_4, %c0_5, %c0_6] : memref<2x4x128xf32, #tpu.memory_space<vmem>>, vector<2x1x128xf32>
    %3 = vector.shape_cast %1 : vector<2x1x128xf32> to vector<2x1x128xf32>
    %4 = vector.broadcast %3 : vector<2x1x128xf32> to vector<2x4x128xf32>
    %5 = vector.shape_cast %2 : vector<2x1x128xf32> to vector<2x1x128xf32>
    %6 = vector.broadcast %5 : vector<2x1x128xf32> to vector<2x4x128xf32>
    %cst = arith.constant 0.000000e+00 : f32
    %7 = vector.broadcast %cst : f32 to vector<2x128xf32>
    %c0_7 = arith.constant 0 : index
    %c0_8 = arith.constant 0 : index
    %c0_9 = arith.constant 0 : index
    %8 = vector.load %arg2[%c0_7, %c0_8, %c0_9] : memref<2x4x128xf32, #tpu.memory_space<vmem>>, vector<2x4x128xf32>
    %c0_10 = arith.constant 0 : index
    %c0_11 = arith.constant 0 : index
    %c0_12 = arith.constant 0 : index
    %9 = vector.load %arg3[%c0_10, %c0_11, %c0_12] : memref<2x4x128xf32, #tpu.memory_space<vmem>>, vector<2x4x128xf32>
    %10 = arith.subf %8, %9 : vector<2x4x128xf32>
    %11 = arith.subf %8, %4 : vector<2x4x128xf32>
    %12 = arith.subf %9, %6 : vector<2x4x128xf32>
    %cst_13 = arith.constant dense<0.000000e+00> : vector<2x128xf32>
    %13 = vector.multi_reduction <add>, %11, %cst_13 [1] : vector<2x4x128xf32> to vector<2x128xf32>
    %14 = arith.addf %7, %13 : vector<2x128xf32>
    %cst_14 = arith.constant dense<0.000000e+00> : vector<2x128xf32>
    %15 = vector.multi_reduction <add>, %12, %cst_14 [1] : vector<2x4x128xf32> to vector<2x128xf32>
    %16 = arith.addf %7, %15 : vector<2x128xf32>
    %17 = arith.mulf %11, %11 : vector<2x4x128xf32>
    %cst_15 = arith.constant dense<0.000000e+00> : vector<2x128xf32>
    %18 = vector.multi_reduction <add>, %17, %cst_15 [1] : vector<2x4x128xf32> to vector<2x128xf32>
    %19 = arith.addf %7, %18 : vector<2x128xf32>
    %20 = arith.mulf %12, %12 : vector<2x4x128xf32>
    %cst_16 = arith.constant dense<0.000000e+00> : vector<2x128xf32>
    %21 = vector.multi_reduction <add>, %20, %cst_16 [1] : vector<2x4x128xf32> to vector<2x128xf32>
    %22 = arith.addf %7, %21 : vector<2x128xf32>
    %23 = arith.mulf %10, %10 : vector<2x4x128xf32>
    %cst_17 = arith.constant dense<0.000000e+00> : vector<2x128xf32>
    %24 = vector.multi_reduction <add>, %23, %cst_17 [1] : vector<2x4x128xf32> to vector<2x128xf32>
    %25 = arith.addf %7, %24 : vector<2x128xf32>
    %26 = arith.mulf %14, %14 : vector<2x128xf32>
    %cst_18 = arith.constant 2.500000e-01 : f32
    %27 = vector.broadcast %cst_18 : f32 to vector<2x128xf32>
    %28 = arith.mulf %26, %27 : vector<2x128xf32>
    %29 = arith.subf %19, %28 : vector<2x128xf32>
    %cst_19 = arith.constant 0.000000e+00 : f32
    %30 = vector.broadcast %cst_19 : f32 to vector<2x128xf32>
    %31 = arith.maximumf %29, %30 : vector<2x128xf32>
    %32 = arith.mulf %16, %16 : vector<2x128xf32>
    %cst_20 = arith.constant 2.500000e-01 : f32
    %33 = vector.broadcast %cst_20 : f32 to vector<2x128xf32>
    %34 = arith.mulf %32, %33 : vector<2x128xf32>
    %35 = arith.subf %22, %34 : vector<2x128xf32>
    %cst_21 = arith.constant 0.000000e+00 : f32
    %36 = vector.broadcast %cst_21 : f32 to vector<2x128xf32>
    %37 = arith.maximumf %35, %36 : vector<2x128xf32>
    %cst_22 = arith.constant 0.333333343 : f32
    %38 = vector.broadcast %cst_22 : f32 to vector<2x128xf32>
    %39 = arith.mulf %31, %38 : vector<2x128xf32>
    %40 = math.sqrt %39 : vector<2x128xf32>
    %cst_23 = arith.constant 0.333333343 : f32
    %41 = vector.broadcast %cst_23 : f32 to vector<2x128xf32>
    %42 = arith.mulf %37, %41 : vector<2x128xf32>
    %43 = math.sqrt %42 : vector<2x128xf32>
    %44 = arith.subf %40, %43 : vector<2x128xf32>
    %45 = math.absf %44 : vector<2x128xf32>
    %46 = vector.broadcast %0 : f32 to vector<2x128xf32>
    %47 = arith.mulf %46, %45 : vector<2x128xf32>
    %c0_24 = arith.constant 0 : index
    %c0_25 = arith.constant 0 : index
    %48 = vector.load %arg4[%c0_24, %c0_25] : memref<2x128xf32, #tpu.memory_space<vmem>>, vector<2x128xf32>
    tpu.vector_store %arg4[%c0_24, %c0_25], %47 {strides = array<i32>} : memref<2x128xf32, #tpu.memory_space<vmem>>, vector<2x128xf32>,
    %c0_26 = arith.constant 0 : index
    %c0_27 = arith.constant 0 : index
    %49 = vector.load %arg5[%c0_26, %c0_27] : memref<2x128xf32, #tpu.memory_space<vmem>>, vector<2x128xf32>
    tpu.vector_store %arg5[%c0_26, %c0_27], %25 {strides = array<i32>} : memref<2x128xf32, #tpu.memory_space<vmem>>, vector<2x128xf32>,
    return
  }
  func.func @transform_0(%arg0: i32) -> (i32, i32) {
    %c0_i32 = arith.constant 0 : i32
    %c0_i32_0 = arith.constant 0 : i32
    %c0_i32_1 = arith.constant 0 : i32
    return %c0_i32, %c0_i32_0 : i32, i32
  }
  func.func @transform_1(%arg0: i32) -> (i32, i32, i32) {
    %c0_i32 = arith.constant 0 : i32
    %c0_i32_0 = arith.constant 0 : i32
    %c0_i32_1 = arith.constant 0 : i32
    return %c0_i32, %c0_i32_0, %arg0 : i32, i32, i32
  }
  func.func @transform_2(%arg0: i32) -> (i32, i32, i32) {
    %c0_i32 = arith.constant 0 : i32
    %c0_i32_0 = arith.constant 0 : i32
    %c0_i32_1 = arith.constant 0 : i32
    return %c0_i32, %c0_i32_0, %arg0 : i32, i32, i32
  }
  func.func @transform_3(%arg0: i32) -> (i32, i32) {
    %c0_i32 = arith.constant 0 : i32
    %c0_i32_0 = arith.constant 0 : i32
    return %c0_i32, %arg0 : i32, i32
  }
  func.func @transform_4(%arg0: i32) -> (i32, i32) {
    %c0_i32 = arith.constant 0 : i32
    %c0_i32_0 = arith.constant 0 : i32
    return %c0_i32, %arg0 : i32, i32
  }
}

</mosaic_0001>

<llo_original>
// kernel: tpu_custom_call.1
$region0: #{tpu_custom_call.1}
  #allocation0 [shape = 'u32[]', space=smem, size = 0x4, offset = 0x4, fixed_abs, tag = 'smem constant byte address 0x4 - core index']
  #allocation1 [shape = 'u32[144,128]{1,0:T(1,128)}', space=vmem, size = 0x12000, scoped, tag = 'internal scratch']
  #allocation2 [shape = 'f32[1,1]{1,0:T(1,128)S(6)}', space=smem, size = 0x200, scoped, tag = 'scoped memory for tpu_custom_call.1']
  %s0 = inlined_call_operand.<no memory space> [shape: f32[1,1], index: 0, kind: input, shape index: {}]
  %s1 = inlined_call_operand.hbm [shape: f32[2,4,256], index: 1, kind: input, shape index: {}]
  %s2 = inlined_call_operand.hbm [shape: f32[2,4,256], index: 2, kind: input, shape index: {}]
  %s3 = inlined_call_operand.hbm [shape: f32[2,256], index: 3, kind: output, shape index: {0}]
  %s4 = inlined_call_operand.hbm [shape: f32[2,256], index: 4, kind: output, shape index: {1}]
  %5 = xla_tuple %s3, %s4
  %s6 = sld [smem:[#allocation0]]
  $region61: #{tpu_custom_call.1} parent=0
    _
  %s8 = ssub.s32 1, %s6
  %s9 = scalar_select 0, %s8, %s6
  %10 = sst [smem:[#allocation2]] %s0
  $region1: #{tpu_custom_call.1} parent=0
    #allocation3 [shape = 'u8[8192]{0}', space=vmem, size = 0x2000, scoped, tag = 'input window, operand 1']
    #allocation4 [shape = 's32[2]{0}', space=sflag, size = 0x8, scoped, tag = 'scoped memory for tpu_custom_call.1']
    #allocation5 [shape = 's32[2]{0}', space=sflag, size = 0x8, scoped, tag = 'scoped memory for tpu_custom_call.1']
    #allocation6 [shape = 'u8[8192]{0}', space=vmem, size = 0x2000, scoped, tag = 'input window, operand 2']
    #allocation7 [shape = 's32[2]{0}', space=sflag, size = 0x8, scoped, tag = 'scoped memory for tpu_custom_call.1']
    #allocation8 [shape = 'u8[2048]{0}', space=vmem, size = 0x800, scoped, tag = 'output window, operand 0']
    #allocation9 [shape = 'u8[2048]{0}', space=vmem, size = 0x800, scoped, tag = 'output window, operand 1']
    #allocation10 [shape = 's32[2]{0}', space=sflag, size = 0x8, scoped, tag = 'scoped memory for tpu_custom_call.1']
    %11 = vsyncpa [#allocation4], 0
    %s12 = scalar_lea.sflag [#allocation4], 1
    %13 = vsyncpa %s12, 0
    %14 = vsyncpa [#allocation7], 0
    %s15 = scalar_lea.sflag [#allocation7], 1
    %16 = vsyncpa %s15, 0
    %17 = vsyncpa [#allocation5], 0
    %s18 = scalar_lea.sflag [#allocation5], 1
    %19 = vsyncpa %s18, 0
    %20 = vsyncpa [#allocation10], 0
    %s21 = scalar_lea.sflag [#allocation10], 1
    %22 = vsyncpa %s21, 0
    loop: start=0, step=1, limit=4
    $region2: #{tpu_custom_call.1} parent=1 // loop_pre_header
      _
    $region3: #{tpu_custom_call.1} parent=1 // loop_header
      %s24 = sphi 0, %s28
      %p25 = scmp.ge.s32.totalorder %s24, 4
      %s32 = sphi 0, %s32
      %s34 = sphi 0, %s32
      %s35 = sphi 0, %s34
      %s49 = sphi 0, %s35
      %s55 = sphi 0, %s57
      %s58 = sphi 0, %s55
      %s59 = sphi 0, %s58
      %s75 = sphi 0, %s59
      %s81 = sphi 0, %s83
      %s84 = sphi 0, %s81
      %s85 = sphi 0, %s84
      %s101 = sphi 0, %s85
      %s107 = sphi 0, %s109
      %s110 = sphi 0, %s107
      %s111 = sphi 0, %s110
      %s127 = sphi 0, %s111
      %s133 = sphi 0, %s135
      %s136 = sphi 0, %s133
      %s137 = sphi 0, %s136
      %s153 = sphi 0, %s137
    $region4: #{tpu_custom_call.1} parent=1 // loop_header_branch
      %27 = sbr.rel (%p25) target = $region8
    $region5: #{tpu_custom_call.1} parent=1 // loop_body
      %s29 = ssub.s32 %s24, 1
      %s30 = ssub.s32 %s24, 2
      %s31 = sadd.s32 %s24, 1
      %s33 = sadd.s32 %s32, 1
      %p36 = scmp.eq.s32.totalorder %s24, 1
      %p37 = scmp.ne.s32.totalorder %s32, %s34
      %p38 = scmp.eq.s32.totalorder %s24, 0
      %p39 = por %p37, %p38
      %p40 = scmp.ne.s32.totalorder %s32, %s34
      %p41 = scmp.eq.s32.totalorder %s29, 1
      %p42 = por %p40, %p41
      %p43 = scmp.ne.s32.totalorder %s34, %s35
      %p44 = scmp.eq.s32.totalorder %s29, 0
      %p45 = por %p43, %p44
      %p46 = scmp.ne.s32.totalorder %s34, %s35
      %p47 = scmp.eq.s32.totalorder %s30, 1
      %p48 = por %p46, %p47
      %p50 = scmp.ne.s32.totalorder %s35, %s49
      %p51 = scmp.eq.s32.totalorder %s30, 0
      %p52 = por %p50, %p51
      %s53 = ssub.s32 %s24, %s31
      %p54 = scmp.eq.s32.totalorder %s53, 0
      %s56 = sadd.s32 %s55, 1
      %s57 = scalar_select %p54, %s55, %s56
      %p60 = pneg %p54
      %p61 = scmp.eq.s32.totalorder %s24, 1
      %p62 = por %p60, %p61
      %p63 = scmp.ne.s32.totalorder %s55, %s58
      %p64 = scmp.eq.s32.totalorder %s24, 0
      %p65 = por %p63, %p64
      %p66 = scmp.ne.s32.totalorder %s55, %s58
      %p67 = scmp.eq.s32.totalorder %s29, 1
      %p68 = por %p66, %p67
      %p69 = scmp.ne.s32.totalorder %s58, %s59
      %p70 = scmp.eq.s32.totalorder %s29, 0
      %p71 = por %p69, %p70
      %p72 = scmp.ne.s32.totalorder %s58, %s59
      %p73 = scmp.eq.s32.totalorder %s30, 1
      %p74 = por %p72, %p73
      %p76 = scmp.ne.s32.totalorder %s59, %s75
      %p77 = scmp.eq.s32.totalorder %s30, 0
      %p78 = por %p76, %p77
      %s79 = ssub.s32 %s24, %s31
      %p80 = scmp.eq.s32.totalorder %s79, 0
      %s82 = sadd.s32 %s81, 1
      %s83 = scalar_select %p80, %s81, %s82
      %p86 = pneg %p80
      %p87 = scmp.eq.s32.totalorder %s24, 1
      %p88 = por %p86, %p87
      %p89 = scmp.ne.s32.totalorder %s81, %s84
      %p90 = scmp.eq.s32.totalorder %s24, 0
      %p91 = por %p89, %p90
      %p92 = scmp.ne.s32.totalorder %s81, %s84
      %p93 = scmp.eq.s32.totalorder %s29, 1
      %p94 = por %p92, %p93
      %p95 = scmp.ne.s32.totalorder %s84, %s85
      %p96 = scmp.eq.s32.totalorder %s29, 0
      %p97 = por %p95, %p96
      %p98 = scmp.ne.s32.totalorder %s84, %s85
      %p99 = scmp.eq.s32.totalorder %s30, 1
      %p100 = por %p98, %p99
      %p102 = scmp.ne.s32.totalorder %s85, %s101
      %p103 = scmp.eq.s32.totalorder %s30, 0
      %p104 = por %p102, %p103
      %s105 = ssub.s32 %s24, %s31
      %p106 = scmp.eq.s32.totalorder %s105, 0
      %s108 = sadd.s32 %s107, 1
      %s109 = scalar_select %p106, %s107, %s108
      %p112 = pneg %p106
      %p113 = scmp.eq.s32.totalorder %s24, 1
      %p114 = por %p112, %p113
      %p115 = scmp.ne.s32.totalorder %s107, %s110
      %p116 = scmp.eq.s32.totalorder %s24, 0
      %p117 = por %p115, %p116
      %p118 = scmp.ne.s32.totalorder %s107, %s110
      %p119 = scmp.eq.s32.totalorder %s29, 1
      %p120 = por %p118, %p119
      %p121 = scmp.ne.s32.totalorder %s110, %s111
      %p122 = scmp.eq.s32.totalorder %s29, 0
      %p123 = por %p121, %p122
      %p124 = scmp.ne.s32.totalorder %s110, %s111
      %p125 = scmp.eq.s32.totalorder %s30, 1
      %p126 = por %p124, %p125
      %p128 = scmp.ne.s32.totalorder %s111, %s127
      %p129 = scmp.eq.s32.totalorder %s30, 0
      %p130 = por %p128, %p129
      %s131 = ssub.s32 %s24, %s31
      %p132 = scmp.eq.s32.totalorder %s131, 0
      %s134 = sadd.s32 %s133, 1
      %s135 = scalar_select %p132, %s133, %s134
      %p138 = pneg %p132
      %p139 = scmp.eq.s32.totalorder %s24, 1
      %p140 = por %p138, %p139
      %p141 = scmp.ne.s32.totalorder %s133, %s136
      %p142 = scmp.eq.s32.totalorder %s24, 0
      %p143 = por %p141, %p142
      %p144 = scmp.ne.s32.totalorder %s133, %s136
      %p145 = scmp.eq.s32.totalorder %s29, 1
      %p146 = por %p144, %p145
      %p147 = scmp.ne.s32.totalorder %s136, %s137
      %p148 = scmp.eq.s32.totalorder %s29, 0
      %p149 = por %p147, %p148
      %p150 = scmp.ne.s32.totalorder %s136, %s137
      %p151 = scmp.eq.s32.totalorder %s30, 1
      %p152 = por %p150, %p151
      %p154 = scmp.ne.s32.totalorder %s137, %s153
      %p155 = scmp.eq.s32.totalorder %s30, 0
      %p156 = por %p154, %p155
      %p157 = scmp.le.s32.totalorder 1, %s24
      %p158 = scmp.lt.s32.totalorder %s24, 3
      %p159 = pnand %p157, %p158
      %p160 = pneg %p159
      // Predicated region
      $region9: #{tpu_custom_call.1} parent=5 // pred_check
        _
      $region10: #{tpu_custom_call.1} parent=5 // pred_check_branch
        %162 = sbr.rel (%p159) target = $region12
      $region11: #{tpu_custom_call.1} parent=5 // pred_region
        %s163 = ssub.s32 %s24, 1
        // Predicated region
        $region13: #{tpu_custom_call.1} parent=11 // pred_check
          %p164 = pneg %p45
        $region14: #{tpu_custom_call.1} parent=11 // pred_check_branch
          %166 = sbr.rel (%p164) target = $region16
        $region15: #{tpu_custom_call.1} parent=11 // pred_region
          _
        $region16: #{tpu_custom_call.1} parent=11 // pred_fallthru
          _
      $region12: #{tpu_custom_call.1} parent=5 // pred_fallthru
        _
      %p167 = scmp.lt.s32.totalorder %s24, 2
      // Predicated region
      $region17: #{tpu_custom_call.1} parent=5 // pred_check
        %p168 = pneg %p167
      $region18: #{tpu_custom_call.1} parent=5 // pred_check_branch
        %170 = sbr.rel (%p168) target = $region20
      $region19: #{tpu_custom_call.1} parent=5 // pred_region
        // Predicated region
        $region21: #{tpu_custom_call.1} parent=19 // pred_check
          %p171 = pneg %p65
        $region22: #{tpu_custom_call.1} parent=19 // pred_check_branch
          %173 = sbr.rel (%p171) target = $region24
        $region23: #{tpu_custom_call.1} parent=19 // pred_region
          %s174 = sand.u32 %s55, 1
          %s175 = scalar_lea.sflag [#allocation4], %s174
          %s176 = sand.u32 %s55, 1
          %s177 = smul.addr %s176, 8
          %s178 = scalar_lea.vmem [#allocation3], %s177
          %s180 = ssub.s32 128, 128
          %181 = vsyncadd %s175, %s180
          %s182 = smul.addr %s24, 64
          %s183 = scalar_lea.hbm %s1, %s182
          %s184 = sshll.u32 %s178, 4
          %s185 = int_to_ptr.vmem [resolvable:$true] %s184
          %190 = dma.hbm_to_vmem [thread:$0]  %s183, 128, %s185, %s175, 128, 64, 4
        $region24: #{tpu_custom_call.1} parent=19 // pred_fallthru
          _
        // Predicated region
        $region25: #{tpu_custom_call.1} parent=19 // pred_check
          %p191 = pneg %p91
        $region26: #{tpu_custom_call.1} parent=19 // pred_check_branch
          %193 = sbr.rel (%p191) target = $region28
        $region27: #{tpu_custom_call.1} parent=19 // pred_region
          %s194 = sand.u32 %s81, 1
          %s195 = scalar_lea.sflag [#allocation7], %s194
          %s196 = sand.u32 %s81, 1
          %s197 = smul.addr %s196, 8
          %s198 = scalar_lea.vmem [#allocation6], %s197
          %s200 = ssub.s32 128, 128
          %201 = vsyncadd %s195, %s200
          %s202 = smul.addr %s24, 64
          %s203 = scalar_lea.hbm %s2, %s202
          %s204 = sshll.u32 %s198, 4
          %s205 = int_to_ptr.vmem [resolvable:$true] %s204
          %210 = dma.hbm_to_vmem [thread:$0]  %s203, 128, %s205, %s195, 128, 64, 4
        $region28: #{tpu_custom_call.1} parent=19 // pred_fallthru
          _
      $region20: #{tpu_custom_call.1} parent=5 // pred_fallthru
        _
      %p211 = scmp.le.s32.totalorder 1, %s24
      %p212 = scmp.lt.s32.totalorder %s24, 3
      %p213 = pnand %p211, %p212
      %p214 = pneg %p213
      // Predicated region
      $region29: #{tpu_custom_call.1} parent=5 // pred_check
        _
      $region30: #{tpu_custom_call.1} parent=5 // pred_check_branch
        %216 = sbr.rel (%p213) target = $region32
      $region31: #{tpu_custom_call.1} parent=5 // pred_region
        %s217 = ssub.s32 %s24, 1
        %s218 = sand.u32 %s58, 1
        %s219 = scalar_lea.sflag [#allocation4], %s218
        %s220 = sand.u32 %s58, 1
        %s221 = smul.addr %s220, 8
        %s222 = scalar_lea.vmem [#allocation3], %s221
        // Predicated region
        $region33: #{tpu_custom_call.1} parent=31 // pred_check
          %p223 = pneg %p71
        $region34: #{tpu_custom_call.1} parent=31 // pred_check_branch
          %225 = sbr.rel (%p223) target = $region36
        $region35: #{tpu_custom_call.1} parent=31 // pred_region
          %226 = dma.done %s219, 128
        $region36: #{tpu_custom_call.1} parent=31 // pred_fallthru
          _
        %s227 = sand.u32 %s84, 1
        %s228 = scalar_lea.sflag [#allocation7], %s227
        %s229 = sand.u32 %s84, 1
        %s230 = smul.addr %s229, 8
        %s231 = scalar_lea.vmem [#allocation6], %s230
        // Predicated region
        $region37: #{tpu_custom_call.1} parent=31 // pred_check
          %p232 = pneg %p97
        $region38: #{tpu_custom_call.1} parent=31 // pred_check_branch
          %234 = sbr.rel (%p232) target = $region40
        $region39: #{tpu_custom_call.1} parent=31 // pred_region
          %235 = dma.done %s228, 128
        $region40: #{tpu_custom_call.1} parent=31 // pred_fallthru
          _
        %p236 = pneg %p45
        %p237 = pneg %p42
        %s238 = sand.u32 %s58, 1
        %s239 = scalar_lea.sflag [#allocation4], %s238
        %s240 = sand.u32 %s58, 1
        %s241 = smul.addr %s240, 8
        %s242 = scalar_lea.vmem [#allocation3], %s241
        %p243 = pneg %p71
        %p244 = pneg %p68
        %s245 = sand.u32 %s84, 1
        %s246 = scalar_lea.sflag [#allocation7], %s245
        %s247 = sand.u32 %s84, 1
        %s248 = smul.addr %s247, 8
        %s249 = scalar_lea.vmem [#allocation6], %s248
        %p250 = pneg %p97
        %p251 = pneg %p94
        %p252 = pneg %p123
        %p253 = pneg %p120
        %s254 = sand.u32 %s110, 1
        %s255 = scalar_lea.sflag [#allocation5], %s254
        %s256 = sand.u32 %s110, 1
        %s257 = smul.addr %s256, 2
        %s258 = scalar_lea.vmem [#allocation8], %s257
        %p259 = pneg %p149
        %p260 = pneg %p146
        %s261 = sand.u32 %s136, 1
        %s262 = scalar_lea.sflag [#allocation10], %s261
        %s263 = sand.u32 %s136, 1
        %s264 = smul.addr %s263, 2
        %s265 = scalar_lea.vmem [#allocation9], %s264
        %s266 = sld [smem:[#allocation2]]
        %v267 = vld [vmem:[%s222] sm:$0x1]
        %v268 = vld [vmem:[%s222 + $0x4] sm:$0x1]
        %v269 = vld [vmem:[%s231] sm:$0x1]
        %v270 = vld [vmem:[%s231 + $0x4] sm:$0x1]
        %v271 = vlaneseq
        %v272 = vshrl.u32 %v271, 7
        %v273 = vsub.s32 0, %v272
        %v274 = vrot.slane %v267, %v273
        %v275 = vlaneseq
        %v276 = vshrl.u32 %v275, 7
        %v277 = vsub.s32 0, %v276
        %v278 = vrot.slane %v268, %v277
        %v279 = vlaneseq
        %v280 = vshrl.u32 %v279, 7
        %v281 = vsub.s32 0, %v280
        %v282 = vrot.slane %v269, %v281
        %v283 = vlaneseq
        %v284 = vshrl.u32 %v283, 7
        %v285 = vsub.s32 0, %v284
        %v286 = vrot.slane %v270, %v285
        %v287 = vld [vmem:[%s222] sm:$0xf]
        %v288 = vld [vmem:[%s222 + $0x4] sm:$0xf]
        %v289 = vld [vmem:[%s231] sm:$0xf]
        %v290 = vld [vmem:[%s231 + $0x4] sm:$0xf]
        %v291 = vsub.f32 %v287, %v289
        %v292 = vsub.f32 %v288, %v290
        %v293 = vsub.f32 %v287, %v274
        %v294 = vsub.f32 %v288, %v278
        %v295 = vsub.f32 %v289, %v282
        %v296 = vsub.f32 %v290, %v286
        %vm297 = vcmask 1043456
        %v298 = vsel %vm297, %v293, 0.0
        %v299 = vrot.slane %v298, 4
        %v300 = vadd.f32 %v298, %v299
        %v301 = vrot.slane %v300, 2
        %v302 = vadd.f32 %v300, %v301
        %v303 = vrot.slane %v302, 1
        %v304 = vadd.f32 %v302, %v303
        %v305 = vsel %vm297, %v294, 0.0
        %v306 = vrot.slane %v305, 4
        %v307 = vadd.f32 %v305, %v306
        %v308 = vrot.slane %v307, 2
        %v309 = vadd.f32 %v307, %v308
        %v310 = vrot.slane %v309, 1
        %v311 = vadd.f32 %v309, %v310
        %v312 = vadd.f32 %v304, 0.0
        %v313 = vadd.f32 %v311, 0.0
        %v314 = vsel %vm297, %v295, 0.0
        %v315 = vrot.slane %v314, 4
        %v316 = vadd.f32 %v314, %v315
        %v317 = vrot.slane %v316, 2
        %v318 = vadd.f32 %v316, %v317
        %v319 = vrot.slane %v318, 1
        %v320 = vadd.f32 %v318, %v319
        %v321 = vsel %vm297, %v296, 0.0
        %v322 = vrot.slane %v321, 4
        %v323 = vadd.f32 %v321, %v322
        %v324 = vrot.slane %v323, 2
        %v325 = vadd.f32 %v323, %v324
        %v326 = vrot.slane %v325, 1
        %v327 = vadd.f32 %v325, %v326
        %v328 = vadd.f32 %v320, 0.0
        %v329 = vadd.f32 %v327, 0.0
        %v330 = vmul.f32 %v293, %v293
        %v331 = vmul.f32 %v294, %v294
        %v332 = vsel %vm297, %v330, 0.0
        %v333 = vrot.slane %v332, 4
        %v334 = vadd.f32 %v332, %v333
        %v335 = vrot.slane %v334, 2
        %v336 = vadd.f32 %v334, %v335
        %v337 = vrot.slane %v336, 1
        %v338 = vadd.f32 %v336, %v337
        %v339 = vsel %vm297, %v331, 0.0
        %v340 = vrot.slane %v339, 4
        %v341 = vadd.f32 %v339, %v340
        %v342 = vrot.slane %v341, 2
        %v343 = vadd.f32 %v341, %v342
        %v344 = vrot.slane %v343, 1
        %v345 = vadd.f32 %v343, %v344
        %v346 = vadd.f32 %v338, 0.0
        %v347 = vadd.f32 %v345, 0.0
        %v348 = vmul.f32 %v295, %v295
        %v349 = vmul.f32 %v296, %v296
        %v350 = vsel %vm297, %v348, 0.0
        %v351 = vrot.slane %v350, 4
        %v352 = vadd.f32 %v350, %v351
        %v353 = vrot.slane %v352, 2
        %v354 = vadd.f32 %v352, %v353
        %v355 = vrot.slane %v354, 1
        %v356 = vadd.f32 %v354, %v355
        %v357 = vsel %vm297, %v349, 0.0
        %v358 = vrot.slane %v357, 4
        %v359 = vadd.f32 %v357, %v358
        %v360 = vrot.slane %v359, 2
        %v361 = vadd.f32 %v359, %v360
        %v362 = vrot.slane %v361, 1
        %v363 = vadd.f32 %v361, %v362
        %v364 = vadd.f32 %v356, 0.0
        %v365 = vadd.f32 %v363, 0.0
        %v366 = vmul.f32 %v291, %v291
        %v367 = vmul.f32 %v292, %v292
        %v368 = vsel %vm297, %v366, 0.0
        %v369 = vrot.slane %v368, 4
        %v370 = vadd.f32 %v368, %v369
        %v371 = vrot.slane %v370, 2
        %v372 = vadd.f32 %v370, %v371
        %v373 = vrot.slane %v372, 1
        %v374 = vadd.f32 %v372, %v373
        %v375 = vsel %vm297, %v367, 0.0
        %v376 = vrot.slane %v375, 4
        %v377 = vadd.f32 %v375, %v376
        %v378 = vrot.slane %v377, 2
        %v379 = vadd.f32 %v377, %v378
        %v380 = vrot.slane %v379, 1
        %v381 = vadd.f32 %v379, %v380
        %v382 = vadd.f32 %v374, 0.0
        %v383 = vadd.f32 %v381, 0.0
        %v384 = vmul.f32 %v312, %v312
        %v385 = vmul.f32 %v313, %v313
        %v386 = vmul.f32 %v384, 0.25
        %v387 = vmul.f32 %v385, 0.25
        %v388 = vsub.f32 %v346, %v386
        %v389 = vsub.f32 %v347, %v387
        %v390 = vmax.f32 %v388, 0.0
        %v391 = vmax.f32 %v389, 0.0
        %v392 = vmul.f32 %v328, %v328
        %v393 = vmul.f32 %v329, %v329
        %v394 = vmul.f32 %v392, 0.25
        %v395 = vmul.f32 %v393, 0.25
        %v396 = vsub.f32 %v364, %v394
        %v397 = vsub.f32 %v365, %v395
        %v398 = vmax.f32 %v396, 0.0
        %v399 = vmax.f32 %v397, 0.0
        %v400 = vmul.f32 %v390, 0.33333334
        %v401 = vmul.f32 %v391, 0.33333334
        %v402 = vrsqrt.pop %v400
        %v403 = vmul.f32 %v400, %v402
        %vm404 = vcmp.eq.f32.partialorder %v400, inf
        %v405 = vsel %vm404, %v400, %v403
        %vm406 = vcmp.eq.f32.partialorder %v400, 0.0
        %v407 = vand.u32 %v400, 2147483648
        %v408 = vsel %vm406, %v407, %v405
        %v409 = vrsqrt.pop %v401
        %v410 = vmul.f32 %v401, %v409
        %vm411 = vcmp.eq.f32.partialorder %v401, inf
        %v412 = vsel %vm411, %v401, %v410
        %vm413 = vcmp.eq.f32.partialorder %v401, 0.0
        %v414 = vand.u32 %v401, 2147483648
        %v415 = vsel %vm413, %v414, %v412
        %v416 = vmul.f32 %v398, 0.33333334
        %v417 = vmul.f32 %v399, 0.33333334
        %v418 = vrsqrt.pop %v416
        %v419 = vmul.f32 %v416, %v418
        %vm420 = vcmp.eq.f32.partialorder %v416, inf
        %v421 = vsel %vm420, %v416, %v419
        %vm422 = vcmp.eq.f32.partialorder %v416, 0.0
        %v423 = vand.u32 %v416, 2147483648
        %v424 = vsel %vm422, %v423, %v421
        %v425 = vrsqrt.pop %v417
        %v426 = vmul.f32 %v417, %v425
        %vm427 = vcmp.eq.f32.partialorder %v417, inf
        %v428 = vsel %vm427, %v417, %v426
        %vm429 = vcmp.eq.f32.partialorder %v417, 0.0
        %v430 = vand.u32 %v417, 2147483648
        %v431 = vsel %vm429, %v430, %v428
        %v432 = vsub.f32 %v408, %v424
        %v433 = vsub.f32 %v415, %v431
        %v434 = vand.u32 2147483647, %v432
        %v435 = vand.u32 2147483647, %v433
        %v436 = vstv %s266
        %v437 = vmul.f32 %v436, %v434
        %v438 = vmul.f32 %v436, %v435
        %vm441 = vcmask 1041409
        %v442 = vsel %vm441, %v438, %v437
        %444 = vst [vmem:[%s258] sm:$0x3] %v442
        %v447 = vsel %vm441, %v383, %v382
        %449 = vst [vmem:[%s265] sm:$0x3] %v447
        %s450 = sand.u32 %s110, 1
        %s451 = scalar_lea.sflag [#allocation5], %s450
        %s452 = sand.u32 %s110, 1
        %s453 = smul.addr %s452, 2
        %s454 = scalar_lea.vmem [#allocation8], %s453
        %s455 = sand.u32 %s136, 1
        %s456 = scalar_lea.sflag [#allocation10], %s455
        %s457 = sand.u32 %s136, 1
        %s458 = smul.addr %s457, 2
        %s459 = scalar_lea.vmem [#allocation9], %s458
        // Predicated region
        $region41: #{tpu_custom_call.1} parent=31 // pred_check
          %p460 = pneg %p120
        $region42: #{tpu_custom_call.1} parent=31 // pred_check_branch
          %462 = sbr.rel (%p460) target = $region44
        $region43: #{tpu_custom_call.1} parent=31 // pred_region
          %s464 = ssub.s32 32, 32
          %465 = vsyncadd %s451, %s464
          %s466 = smul.addr %s29, 32
          %s467 = scalar_lea.hbm %s3, %s466
          %s469 = sshll.u32 %s454, 4
          %s470 = int_to_ptr.vmem [resolvable:$true] %s469
          %472 = dma.vmem_to_hbm [thread:$0]  %s470, 32, %s467, %s451
        $region44: #{tpu_custom_call.1} parent=31 // pred_fallthru
          _
        // Predicated region
        $region45: #{tpu_custom_call.1} parent=31 // pred_check
          %p473 = pneg %p146
        $region46: #{tpu_custom_call.1} parent=31 // pred_check_branch
          %475 = sbr.rel (%p473) target = $region48
        $region47: #{tpu_custom_call.1} parent=31 // pred_region
          %s477 = ssub.s32 32, 32
          %478 = vsyncadd %s456, %s477
          %s479 = smul.addr %s29, 32
          %s480 = scalar_lea.hbm %s4, %s479
          %s482 = sshll.u32 %s459, 4
          %s483 = int_to_ptr.vmem [resolvable:$true] %s482
          %485 = dma.vmem_to_hbm [thread:$0]  %s483, 32, %s480, %s456
        $region48: #{tpu_custom_call.1} parent=31 // pred_fallthru
          _
      $region32: #{tpu_custom_call.1} parent=5 // pred_fallthru
        _
      %p486 = scmp.le.s32.totalorder 2, %s24
      // Predicated region
      $region49: #{tpu_custom_call.1} parent=5 // pred_check
        %p487 = pneg %p486
      $region50: #{tpu_custom_call.1} parent=5 // pred_check_branch
        %489 = sbr.rel (%p487) target = $region52
      $region51: #{tpu_custom_call.1} parent=5 // pred_region
        %s490 = ssub.s32 %s24, 2
        // Predicated region
        $region53: #{tpu_custom_call.1} parent=51 // pred_check
          %p491 = pneg %p126
        $region54: #{tpu_custom_call.1} parent=51 // pred_check_branch
          %493 = sbr.rel (%p491) target = $region56
        $region55: #{tpu_custom_call.1} parent=51 // pred_region
          %s494 = sand.u32 %s111, 1
          %s495 = scalar_lea.sflag [#allocation5], %s494
          %s496 = sand.u32 %s111, 1
          %s497 = smul.addr %s496, 2
          %s498 = scalar_lea.vmem [#allocation8], %s497
          %499 = dma.done %s495, 32
        $region56: #{tpu_custom_call.1} parent=51 // pred_fallthru
          _
        // Predicated region
        $region57: #{tpu_custom_call.1} parent=51 // pred_check
          %p500 = pneg %p152
        $region58: #{tpu_custom_call.1} parent=51 // pred_check_branch
          %502 = sbr.rel (%p500) target = $region60
        $region59: #{tpu_custom_call.1} parent=51 // pred_region
          %s503 = sand.u32 %s137, 1
          %s504 = scalar_lea.sflag [#allocation10], %s503
          %s505 = sand.u32 %s137, 1
          %s506 = smul.addr %s505, 2
          %s507 = scalar_lea.vmem [#allocation9], %s506
          %508 = dma.done %s504, 32
        $region60: #{tpu_custom_call.1} parent=51 // pred_fallthru
          _
      $region52: #{tpu_custom_call.1} parent=5 // pred_fallthru
        _
    $region6: #{tpu_custom_call.1} parent=1 // loop_footer
      %s28 = sadd.s32 1, %s24
    $region7: #{tpu_custom_call.1} parent=1 // loop_footer_branch
      %23 = sbr.rel target = $region3
    $region8: #{tpu_custom_call.1} parent=1 // loop_exit
      _
    %509 = vsyncpa [#allocation4], 1
    %s510 = scalar_lea.sflag [#allocation4], 1
    %511 = vsyncpa %s510, 1
    %512 = vsyncpa [#allocation7], 1
    %s513 = scalar_lea.sflag [#allocation7], 1
    %514 = vsyncpa %s513, 1
    %515 = vsyncpa [#allocation5], 1
    %s516 = scalar_lea.sflag [#allocation5], 1
    %517 = vsyncpa %s516, 1
    %518 = vsyncpa [#allocation10], 1
    %s519 = scalar_lea.sflag [#allocation10], 1
    %520 = vsyncpa %s519, 1

</llo_original>
